<compile_context>
chip_gen: v7x
topology: tpu7x:2x2x1
jax: 0.10.0
libtpu: 0.0.40
codegen_flags: <defaults>
</compile_context>

<pallas_src>
import functools

import jax
import jax.numpy as jnp
from jax.experimental import pallas as pl
from jax.experimental.pallas import tpu as pltpu

# ---- hyperparameters (module defaults, shrunk where the task allows) ----
BATCH = 2
CHANNELS = 4
SPATIAL = 16
D_IN = CHANNELS * SPATIAL * SPATIAL   # flattened backbone input (1024)
OUTPUT_DIM = 32                       # backbone output dim (torch default 1000, small here)
NUM_HIDDEN_UNITS = 2                  # feat_dim of dce / ip Linear out-features
NUM_CLASSES = 10
SCALE = 2.0

LANES = 128                           # packed output slab width
FEAT_OFF = 0                          # feats at lane 0
DIST_OFF = 32                         # distance at lane 32 (lane-multiple aligned)
OUT_OFF = 64                          # log_softmax outputs at lane 64

BT = 16                               # batch tile: bf16 sublane-aligned (16,128) tiles

# Layout guards (the torch default output_dim=1000 would overflow the packed tile).
assert OUTPUT_DIM <= LANES, "packed parameter tile holds at most 128 lanes per row"
assert NUM_CLASSES <= LANES
assert NUM_HIDDEN_UNITS == 2, "kernel hard-codes feat_dim == 2 (f0/f1, centers rows 3-4)"
assert NUM_HIDDEN_UNITS <= DIST_OFF
assert DIST_OFF + NUM_CLASSES <= OUT_OFF
assert OUT_OFF + NUM_CLASSES <= LANES


def prototype_kernel(x_ref, wbb_ref, p_ref, out_ref):
    # x_ref:   [BT, D_IN]           bf16   (batch tile)
    # wbb_ref: [D_IN, OUTPUT_DIM]   bf16   (resident across the batch grid)
    # p_ref:   [8, 128]             f32    (packed small params, one DMA)
    #   row 0: backbone bias, row 1/2: ip weight cols, row 3/4: centers rows,
    #   row 5: [prelu_a, bip0, bip1]

    # ---- backbone stub: flatten + Linear (the only MXU-worthy contraction) ----
    h = jnp.dot(x_ref[...], wbb_ref[...],
                preferred_element_type=jnp.float32)                   # bf16 MXU, f32 acc
    h = h + p_ref[0:1, 0:OUTPUT_DIM]                                   # + bbb (broadcast)

    # ---- ip = Sequential(PReLU(), Linear(OUTPUT_DIM, 2)), all f32 on the VPU ----
    a = p_ref[5:6, 0:1]                                                # PReLU weight [1,1]
    b0 = p_ref[5:6, 1:2]                                               # ip bias[0]
    b1 = p_ref[5:6, 2:3]                                               # ip bias[1]
    h = jnp.where(h > 0, h, a * h)                                     # PReLU (shared weight)
    w0 = p_ref[1:2, 0:OUTPUT_DIM]
    w1 = p_ref[2:3, 0:OUTPUT_DIM]
    f0 = jnp.sum(h * w0, axis=1, keepdims=True) + b0                   # [BT, 1] (VPU + XLU)
    f1 = jnp.sum(h * w1, axis=1, keepdims=True) + b1                   # [BT, 1]

    # ---- dce_loss: dist = ||f||^2 + ||c||^2 - 2 f.c ; module returns -dist ----
    # K = feat_dim = 2, fully unrolled on the VPU (no extra MXU round trip).
    c0 = p_ref[3:4, 0:NUM_CLASSES]
    c1 = p_ref[4:5, 0:NUM_CLASSES]
    fc2 = 2.0 * (f0 * c0 + f1 * c1)                                    # [BT, 10]
    fs = f0 * f0 + f1 * f1                                             # [BT, 1]
    cs = c0 * c0 + c1 * c1                                             # [1, 10]
    distance = -(fs + cs - fc2)                                        # [BT, 10]

    # ---- outputs = log_softmax(scale * distance, dim=1) ----
    z = SCALE * distance
    m = jnp.max(z, axis=1, keepdims=True)
    lse = jnp.log(jnp.sum(jnp.exp(z - m), axis=1, keepdims=True)) + m
    outputs = z - lse

    # ---- single lane-dense [BT, 128] output slab, lane-aligned segments ----
    bt = f0.shape[0]
    pad_a = jnp.zeros((bt, DIST_OFF - NUM_HIDDEN_UNITS), jnp.float32)       # 30
    pad_b = jnp.zeros((bt, OUT_OFF - DIST_OFF - NUM_CLASSES), jnp.float32)  # 22
    pad_c = jnp.zeros((bt, LANES - OUT_OFF - NUM_CLASSES), jnp.float32)     # 54
    out_ref[...] = jnp.concatenate(
        [f0, f1, pad_a, distance, pad_b, outputs, pad_c], axis=1)


def pack_params(params):
    """Call ONCE at init time: packs the tiny params and casts the weight to bf16.

    Hoists all per-call XLA packing ops out of the forward hot path.
    """
    wbb, bbb, prelu_a, wip, bip, centers = params
    packed = jnp.zeros((8, LANES), jnp.float32)
    packed = packed.at[0, :OUTPUT_DIM].set(bbb.reshape(-1))      # backbone bias
    packed = packed.at[1, :OUTPUT_DIM].set(wip[:, 0])            # ip weight col 0
    packed = packed.at[2, :OUTPUT_DIM].set(wip[:, 1])            # ip weight col 1
    packed = packed.at[3, :NUM_CLASSES].set(centers[0])          # centers row 0
    packed = packed.at[4, :NUM_CLASSES].set(centers[1])          # centers row 1
    packed = packed.at[5, 0].set(prelu_a.reshape(-1)[0])         # PReLU weight
    packed = packed.at[5, 1].set(bip.reshape(-1)[0])             # ip bias[0]
    packed = packed.at[5, 2].set(bip.reshape(-1)[1])             # ip bias[1]
    wbb_bf16 = wbb.astype(jnp.bfloat16)                          # MXU feed dtype
    return wbb_bf16, packed, centers


@functools.partial(jax.jit, static_argnames=())
def prototype_forward(x, wbb_bf16, packed, centers):
    """x: [B, C, H, W] float32.  Returns (features, centers, distance, outputs)."""
    B = x.shape[0]
    x_flat = x.reshape(B, -1)                       # glue: NCHW -> [B, C*H*W] (lane-dense)
    bp = ((B + BT - 1) // BT) * BT                  # pad batch to the tile size
    if bp != B:
        x_flat = jnp.pad(x_flat, ((0, bp - B), (0, 0)))
    x_bf16 = x_flat.astype(jnp.bfloat16)
    n_tiles = bp // BT

    flops = (2 * bp * D_IN * OUTPUT_DIM
             + 2 * bp * OUTPUT_DIM * NUM_HIDDEN_UNITS
             + 2 * bp * NUM_HIDDEN_UNITS * NUM_CLASSES
             + 8 * bp * NUM_CLASSES)
    bytes_accessed = (2 * bp * D_IN + 2 * D_IN * OUTPUT_DIM
                      + 4 * 8 * LANES + 4 * bp * LANES)
    transcendentals = bp * (NUM_CLASSES + 1)

    slab = pl.pallas_call(
        prototype_kernel,
        out_shape=jax.ShapeDtypeStruct((bp, LANES), jnp.float32),
        grid_spec=pltpu.PrefetchScalarGridSpec(
            num_scalar_prefetch=0,
            grid=(n_tiles,),
            in_specs=[
                pl.BlockSpec((BT, D_IN), lambda i: (i, 0)),             # batch tile
                pl.BlockSpec((D_IN, OUTPUT_DIM), lambda i: (0, 0)),     # weight: resident
                pl.BlockSpec((8, LANES), lambda i: (0, 0)),             # packed: resident
            ],
            out_specs=pl.BlockSpec((BT, LANES), lambda i: (i, 0)),
        ),
        compiler_params=pltpu.CompilerParams(
            dimension_semantics=("parallel",)),                         # megacore on v7x
        cost_estimate=pl.CostEstimate(flops=flops,
                                      transcendentals=transcendentals,
                                      bytes_accessed=bytes_accessed),
    )(x_bf16, wbb_bf16, packed)

    feats = slab[:B, FEAT_OFF:FEAT_OFF + NUM_HIDDEN_UNITS]
    distance = slab[:B, DIST_OFF:DIST_OFF + NUM_CLASSES]
    outputs = slab[:B, OUT_OFF:OUT_OFF + NUM_CLASSES]
    return feats, centers, distance, outputs


def make_params(key):
    """Deterministic parameter init matching the torch module's shapes."""
    k1, k2, k3, _ = jax.random.split(key, 4)
    # backbone stub Linear(D_IN, OUTPUT_DIM)
    wbb = (jax.random.normal(k1, (D_IN, OUTPUT_DIM), jnp.float32)
           / jnp.sqrt(jnp.float32(D_IN)))
    bbb = jnp.zeros((1, OUTPUT_DIM), jnp.float32)
    # nn.PReLU() default single weight = 0.25
    prelu_a = jnp.full((1, 1), 0.25, jnp.float32)
    # nn.Linear(OUTPUT_DIM, NUM_HIDDEN_UNITS)  (stored here as [in, out])
    wip = (jax.random.normal(k2, (OUTPUT_DIM, NUM_HIDDEN_UNITS), jnp.float32)
           / jnp.sqrt(jnp.float32(OUTPUT_DIM)))
    bip = jnp.zeros((1, NUM_HIDDEN_UNITS), jnp.float32)
    # dce centers: [feat_dim, n_classes], kaiming-normal-ish
    centers = (jax.random.normal(k3, (NUM_HIDDEN_UNITS, NUM_CLASSES), jnp.float32)
               * jnp.sqrt(2.0 / NUM_HIDDEN_UNITS))
    return wbb, bbb, prelu_a, wip, bip, centers


def reference_forward(x, params):
    """Pure-JAX reference of the same math (same dtype policy: bf16 MXU feed)."""
    wbb, bbb, prelu_a, wip, bip, centers = params
    B = x.shape[0]
    xf = x.reshape(B, -1).astype(jnp.float32)
    h = jnp.dot(xf.astype(jnp.bfloat16), wbb.astype(jnp.bfloat16),
                preferred_element_type=jnp.float32) + bbb
    a = prelu_a[0, 0]
    h = jnp.where(h > 0, h, a * h)
    feats = h @ wip + bip
    fs = jnp.sum(feats ** 2, axis=1, keepdims=True)
    cs = jnp.sum(centers ** 2, axis=0, keepdims=True)
    dist = fs + cs - 2.0 * (feats @ centers)
    distance = -dist
    outputs = jax.nn.log_softmax(SCALE * distance, axis=1)
    return feats, centers, distance, outputs


if __name__ == "__main__":
    key = jax.random.PRNGKey(0)
    kx, kp = jax.random.split(key)
    x = jax.random.normal(kx, (BATCH, CHANNELS, SPATIAL, SPATIAL), jnp.float32)
    params = make_params(kp)
    wbb_bf16, packed, centers_p = pack_params(params)   # one-time prep, off the hot path

    feats, centers, distance, outputs = prototype_forward(x, wbb_bf16, packed, centers_p)
    jax.block_until_ready((feats, centers, distance, outputs))

    rf, rc, rd, ro = reference_forward(x, params)
    assert feats.shape == (BATCH, NUM_HIDDEN_UNITS)
    assert centers.shape == (NUM_HIDDEN_UNITS, NUM_CLASSES)
    assert distance.shape == (BATCH, NUM_CLASSES)
    assert outputs.shape == (BATCH, NUM_CLASSES)
    assert jnp.allclose(feats, rf, rtol=2e-3, atol=2e-3)
    assert jnp.allclose(centers, rc, rtol=1e-6, atol=1e-6)
    assert jnp.allclose(distance, rd, rtol=2e-3, atol=2e-3)
    assert jnp.allclose(outputs, ro, rtol=2e-3, atol=2e-3)

    print("KERNEL_OK")
</pallas_src>

<mosaic_0001>
module attributes {stable_mosaic.version = 11 : i64} {
  func.func @prototype_kernel(%arg0: i32, %arg1: memref<16x1024xbf16, #tpu.memory_space<vmem>>, %arg2: memref<1024x32xbf16, #tpu.memory_space<vmem>>, %arg3: memref<8x128xf32, #tpu.memory_space<vmem>>, %arg4: memref<16x128xf32, #tpu.memory_space<vmem>>) attributes {dimension_semantics = [#tpu.dimension_semantics<parallel>], iteration_bounds = array<i64: 1>, scalar_prefetch = 0 : i64, scratch_operands = 0 : i64, tpu.core_type = #tpu.core_type<tc>, window_params = [{transform_indices = @transform_0, window_bounds = array<i64: 16, 1024>}, {pipeline_mode = #tpu.pipeline_mode<synchronous>, transform_indices = @transform_1, window_bounds = array<i64: 1024, 32>}, {pipeline_mode = #tpu.pipeline_mode<synchronous>, transform_indices = @transform_2, window_bounds = array<i64: 8, 128>}, {transform_indices = @transform_3, window_bounds = array<i64: 16, 128>}]} {
    %c0 = arith.constant 0 : index
    %c0_0 = arith.constant 0 : index
    %0 = vector.load %arg1[%c0, %c0_0] : memref<16x1024xbf16, #tpu.memory_space<vmem>>, vector<16x1024xbf16>
    %c0_1 = arith.constant 0 : index
    %c0_2 = arith.constant 0 : index
    %1 = vector.load %arg2[%c0_1, %c0_2] : memref<1024x32xbf16, #tpu.memory_space<vmem>>, vector<1024x32xbf16>
    %cst = arith.constant dense<0.000000e+00> : vector<16x32xf32>
    %2 = tpu.matmul %0, %1, %cst {dimension_numbers = #tpu.dot_dimension_numbers<[1], [0], [0], [1], [0, 0, 1, 1], [], []>} : vector<16x1024xbf16>, vector<1024x32xbf16>, vector<16x32xf32> -> vector<16x32xf32>
    %c0_3 = arith.constant 0 : index
    %c0_4 = arith.constant 0 : index
    %3 = vector.load %arg3[%c0_3, %c0_4] : memref<8x128xf32, #tpu.memory_space<vmem>>, vector<1x32xf32>
    %4 = vector.broadcast %3 : vector<1x32xf32> to vector<16x32xf32>
    %5 = arith.addf %2, %4 : vector<16x32xf32>
    %c5 = arith.constant 5 : index
    %c0_5 = arith.constant 0 : index
    %6 = vector.load %arg3[%c5, %c0_5] : memref<8x128xf32, #tpu.memory_space<vmem>>, vector<1x1xf32>
    %c5_6 = arith.constant 5 : index
    %c1 = arith.constant 1 : index
    %7 = vector.load %arg3[%c5_6, %c1] : memref<8x128xf32, #tpu.memory_space<vmem>>, vector<1x1xf32>
    %c5_7 = arith.constant 5 : index
    %c2 = arith.constant 2 : index
    %8 = vector.load %arg3[%c5_7, %c2] : memref<8x128xf32, #tpu.memory_space<vmem>>, vector<1x1xf32>
    %cst_8 = arith.constant 0.000000e+00 : f32
    %9 = vector.broadcast %cst_8 : f32 to vector<16x32xf32>
    %10 = arith.cmpf ogt, %5, %9 : vector<16x32xf32>
    %11 = vector.broadcast %6 : vector<1x1xf32> to vector<16x32xf32>
    %12 = arith.mulf %11, %5 : vector<16x32xf32>
    %13 = arith.select %10, %5, %12 : vector<16x32xi1>, vector<16x32xf32>
    %c1_9 = arith.constant 1 : index
    %c0_10 = arith.constant 0 : index
    %14 = vector.load %arg3[%c1_9, %c0_10] : memref<8x128xf32, #tpu.memory_space<vmem>>, vector<1x32xf32>
    %c2_11 = arith.constant 2 : index
    %c0_12 = arith.constant 0 : index
    %15 = vector.load %arg3[%c2_11, %c0_12] : memref<8x128xf32, #tpu.memory_space<vmem>>, vector<1x32xf32>
    %16 = vector.broadcast %14 : vector<1x32xf32> to vector<16x32xf32>
    %17 = arith.mulf %13, %16 : vector<16x32xf32>
    %cst_13 = arith.constant dense<0.000000e+00> : vector<16xf32>
    %18 = vector.multi_reduction <add>, %17, %cst_13 [1] : vector<16x32xf32> to vector<16xf32>
    %19 = vector.shape_cast %18 : vector<16xf32> to vector<16x1xf32>
    %20 = vector.broadcast %7 : vector<1x1xf32> to vector<16x1xf32>
    %21 = arith.addf %19, %20 : vector<16x1xf32>
    %22 = vector.broadcast %15 : vector<1x32xf32> to vector<16x32xf32>
    %23 = arith.mulf %13, %22 : vector<16x32xf32>
    %cst_14 = arith.constant dense<0.000000e+00> : vector<16xf32>
    %24 = vector.multi_reduction <add>, %23, %cst_14 [1] : vector<16x32xf32> to vector<16xf32>
    %25 = vector.shape_cast %24 : vector<16xf32> to vector<16x1xf32>
    %26 = vector.broadcast %8 : vector<1x1xf32> to vector<16x1xf32>
    %27 = arith.addf %25, %26 : vector<16x1xf32>
    %c3 = arith.constant 3 : index
    %c0_15 = arith.constant 0 : index
    %28 = vector.load %arg3[%c3, %c0_15] : memref<8x128xf32, #tpu.memory_space<vmem>>, vector<1x10xf32>
    %c4 = arith.constant 4 : index
    %c0_16 = arith.constant 0 : index
    %29 = vector.load %arg3[%c4, %c0_16] : memref<8x128xf32, #tpu.memory_space<vmem>>, vector<1x10xf32>
    %30 = vector.broadcast %21 : vector<16x1xf32> to vector<16x10xf32>
    %31 = vector.broadcast %28 : vector<1x10xf32> to vector<16x10xf32>
    %32 = arith.mulf %30, %31 : vector<16x10xf32>
    %33 = vector.broadcast %27 : vector<16x1xf32> to vector<16x10xf32>
    %34 = vector.broadcast %29 : vector<1x10xf32> to vector<16x10xf32>
    %35 = arith.mulf %33, %34 : vector<16x10xf32>
    %36 = arith.addf %32, %35 : vector<16x10xf32>
    %cst_17 = arith.constant 2.000000e+00 : f32
    %37 = vector.broadcast %cst_17 : f32 to vector<16x10xf32>
    %38 = arith.mulf %37, %36 : vector<16x10xf32>
    %39 = arith.mulf %21, %21 : vector<16x1xf32>
    %40 = arith.mulf %27, %27 : vector<16x1xf32>
    %41 = arith.addf %39, %40 : vector<16x1xf32>
    %42 = arith.mulf %28, %28 : vector<1x10xf32>
    %43 = arith.mulf %29, %29 : vector<1x10xf32>
    %44 = arith.addf %42, %43 : vector<1x10xf32>
    %45 = vector.broadcast %41 : vector<16x1xf32> to vector<16x10xf32>
    %46 = vector.broadcast %44 : vector<1x10xf32> to vector<16x10xf32>
    %47 = arith.addf %45, %46 : vector<16x10xf32>
    %48 = arith.subf %47, %38 : vector<16x10xf32>
    %cst_18 = arith.constant 0.000000e+00 : f32
    %49 = vector.broadcast %cst_18 : f32 to vector<16x10xf32>
    %50 = arith.subf %49, %48 : vector<16x10xf32>
    %cst_19 = arith.constant 2.000000e+00 : f32
    %51 = vector.broadcast %cst_19 : f32 to vector<16x10xf32>
    %52 = arith.mulf %51, %50 : vector<16x10xf32>
    %cst_20 = arith.constant dense<0xFF800000> : vector<16xf32>
    %53 = vector.multi_reduction <maximumf>, %52, %cst_20 [1] : vector<16x10xf32> to vector<16xf32>
    %54 = vector.shape_cast %53 : vector<16xf32> to vector<16x1xf32>
    %55 = vector.broadcast %54 : vector<16x1xf32> to vector<16x10xf32>
    %56 = arith.subf %52, %55 : vector<16x10xf32>
    %57 = math.exp %56 : vector<16x10xf32>
    %cst_21 = arith.constant dense<0.000000e+00> : vector<16xf32>
    %58 = vector.multi_reduction <add>, %57, %cst_21 [1] : vector<16x10xf32> to vector<16xf32>
    %59 = vector.shape_cast %58 : vector<16xf32> to vector<16x1xf32>
    %60 = math.log %59 : vector<16x1xf32>
    %61 = arith.addf %60, %54 : vector<16x1xf32>
    %62 = vector.broadcast %61 : vector<16x1xf32> to vector<16x10xf32>
    %63 = arith.subf %52, %62 : vector<16x10xf32>
    %cst_22 = arith.constant 0.000000e+00 : f32
    %64 = vector.broadcast %cst_22 : f32 to vector<16x30xf32>
    %cst_23 = arith.constant 0.000000e+00 : f32
    %65 = vector.broadcast %cst_23 : f32 to vector<16x22xf32>
    %cst_24 = arith.constant 0.000000e+00 : f32
    %66 = vector.broadcast %cst_24 : f32 to vector<16x54xf32>
    %67 = tpu.concatenate %21, %27, %64, %50, %65, %63, %66 in 1 : vector<16x1xf32>, vector<16x1xf32>, vector<16x30xf32>, vector<16x10xf32>, vector<16x22xf32>, vector<16x10xf32>, vector<16x54xf32> -> vector<16x128xf32>
    %c0_25 = arith.constant 0 : index
    %c0_26 = arith.constant 0 : index
    %68 = vector.load %arg4[%c0_25, %c0_26] : memref<16x128xf32, #tpu.memory_space<vmem>>, vector<16x128xf32>
    tpu.vector_store %arg4[%c0_25, %c0_26], %67 {strides = array<i32>} : memref<16x128xf32, #tpu.memory_space<vmem>>, vector<16x128xf32>,
    return
  }
  func.func @transform_0(%arg0: i32) -> (i32, i32) {
    %c0_i32 = arith.constant 0 : i32
    %c0_i32_0 = arith.constant 0 : i32
    return %arg0, %c0_i32 : i32, i32
  }
  func.func @transform_1(%arg0: i32) -> (i32, i32) {
    %c0_i32 = arith.constant 0 : i32
    %c0_i32_0 = arith.constant 0 : i32
    %c0_i32_1 = arith.constant 0 : i32
    return %c0_i32, %c0_i32_0 : i32, i32
  }
  func.func @transform_2(%arg0: i32) -> (i32, i32) {
    %c0_i32 = arith.constant 0 : i32
    %c0_i32_0 = arith.constant 0 : i32
    %c0_i32_1 = arith.constant 0 : i32
    return %c0_i32, %c0_i32_0 : i32, i32
  }
  func.func @transform_3(%arg0: i32) -> (i32, i32) {
    %c0_i32 = arith.constant 0 : i32
    %c0_i32_0 = arith.constant 0 : i32
    return %arg0, %c0_i32 : i32, i32
  }
}

</mosaic_0001>

<llo_original>
// kernel: prototype_forward.1
$region0: #{prototype_forward.1}
  #allocation0 [shape = 'u32[]', space=smem, size = 0x4, offset = 0x4, fixed_abs, tag = 'smem constant byte address 0x4 - core index']
  #allocation1 [shape = 'u32[144,128]{1,0:T(1,128)}', space=vmem, size = 0x12000, scoped, tag = 'internal scratch']
  %s0 = inlined_call_operand.vmem [shape: bf16[16,1024], index: 0, kind: input, shape index: {}]
  %s1 = inlined_call_operand.vmem [shape: bf16[1024,32], index: 1, kind: input, shape index: {}]
  %s2 = inlined_call_operand.vmem [shape: f32[8,128], index: 2, kind: input, shape index: {}]
  %s3 = inlined_call_operand.vmem [shape: f32[16,128], index: 3, kind: output, shape index: {}]
  %s4 = sld [smem:[#allocation0]]
  $region22: #{prototype_forward.1} parent=0
    _
  %s6 = ssub.s32 1, %s4
  %s7 = scalar_select 0, %s6, %s4
  // Predicated region
  $region2: #{prototype_forward.1} parent=0 // pred_check
    _
  $region3: #{prototype_forward.1} parent=0 // pred_check_branch
    %9 = sbr.rel (0) target = $region5
  $region4: #{prototype_forward.1} parent=0 // pred_region
    _
  $region5: #{prototype_forward.1} parent=0 // pred_fallthru
    _
  // Predicated region
  $region6: #{prototype_forward.1} parent=0 // pred_check
    _
  $region7: #{prototype_forward.1} parent=0 // pred_check_branch
    %11 = sbr.rel (0) target = $region9
  $region8: #{prototype_forward.1} parent=0 // pred_region
    _
  $region9: #{prototype_forward.1} parent=0 // pred_fallthru
    _
  // Predicated region
  $region10: #{prototype_forward.1} parent=0 // pred_check
    _
  $region11: #{prototype_forward.1} parent=0 // pred_check_branch
    %13 = sbr.rel (0) target = $region13
  $region12: #{prototype_forward.1} parent=0 // pred_region
    _
  $region13: #{prototype_forward.1} parent=0 // pred_fallthru
    _
  %v15 = vld [vmem:[%s0] sm:$0xff]
  %v16 = vld [vmem:[%s0 + $0x8] sm:$0xff]
  %v17 = vld [vmem:[%s0 + $0x10] sm:$0xff]
  %v18 = vld [vmem:[%s0 + $0x18] sm:$0xff]
  %v19 = vld [vmem:[%s0 + $0x20] sm:$0xff]
  %v20 = vld [vmem:[%s0 + $0x28] sm:$0xff]
  %v21 = vld [vmem:[%s0 + $0x30] sm:$0xff]
  %v22 = vld [vmem:[%s0 + $0x38] sm:$0xff]
  %v23 = vld [vmem:[%s1] sm:$0xf]
  %v24 = vld [vmem:[%s1 + $0x4] sm:$0xf]
  %v25 = vld [vmem:[%s1 + $0x8] sm:$0xf]
  %v26 = vld [vmem:[%s1 + $0xc] sm:$0xf]
  %v27 = vld [vmem:[%s1 + $0x10] sm:$0xf]
  %v28 = vld [vmem:[%s1 + $0x14] sm:$0xf]
  %v29 = vld [vmem:[%s1 + $0x18] sm:$0xf]
  %v30 = vld [vmem:[%s1 + $0x1c] sm:$0xf]
  %v31 = vld [vmem:[%s1 + $0x20] sm:$0xf]
  %v32 = vld [vmem:[%s1 + $0x24] sm:$0xf]
  %v33 = vld [vmem:[%s1 + $0x28] sm:$0xf]
  %v34 = vld [vmem:[%s1 + $0x2c] sm:$0xf]
  %v35 = vld [vmem:[%s1 + $0x30] sm:$0xf]
  %v36 = vld [vmem:[%s1 + $0x34] sm:$0xf]
  %v37 = vld [vmem:[%s1 + $0x38] sm:$0xf]
  %v38 = vld [vmem:[%s1 + $0x3c] sm:$0xf]
  %v39 = vld [vmem:[%s1 + $0x40] sm:$0xf]
  %v40 = vld [vmem:[%s1 + $0x44] sm:$0xf]
  %v41 = vld [vmem:[%s1 + $0x48] sm:$0xf]
  %v42 = vld [vmem:[%s1 + $0x4c] sm:$0xf]
  %v43 = vld [vmem:[%s1 + $0x50] sm:$0xf]
  %v44 = vld [vmem:[%s1 + $0x54] sm:$0xf]
  %v45 = vld [vmem:[%s1 + $0x58] sm:$0xf]
  %v46 = vld [vmem:[%s1 + $0x5c] sm:$0xf]
  %v47 = vld [vmem:[%s1 + $0x60] sm:$0xf]
  %v48 = vld [vmem:[%s1 + $0x64] sm:$0xf]
  %v49 = vld [vmem:[%s1 + $0x68] sm:$0xf]
  %v50 = vld [vmem:[%s1 + $0x6c] sm:$0xf]
  %v51 = vld [vmem:[%s1 + $0x70] sm:$0xf]
  %v52 = vld [vmem:[%s1 + $0x74] sm:$0xf]
  %v53 = vld [vmem:[%s1 + $0x78] sm:$0xf]
  %v54 = vld [vmem:[%s1 + $0x7c] sm:$0xf]
  %v55 = vld [vmem:[%s1 + $0x80] sm:$0xf]
  %v56 = vld [vmem:[%s1 + $0x84] sm:$0xf]
  %v57 = vld [vmem:[%s1 + $0x88] sm:$0xf]
  %v58 = vld [vmem:[%s1 + $0x8c] sm:$0xf]
  %v59 = vld [vmem:[%s1 + $0x90] sm:$0xf]
  %v60 = vld [vmem:[%s1 + $0x94] sm:$0xf]
  %v61 = vld [vmem:[%s1 + $0x98] sm:$0xf]
  %v62 = vld [vmem:[%s1 + $0x9c] sm:$0xf]
  %v63 = vld [vmem:[%s1 + $0xa0] sm:$0xf]
  %v64 = vld [vmem:[%s1 + $0xa4] sm:$0xf]
  %v65 = vld [vmem:[%s1 + $0xa8] sm:$0xf]
  %v66 = vld [vmem:[%s1 + $0xac] sm:$0xf]
  %v67 = vld [vmem:[%s1 + $0xb0] sm:$0xf]
  %v68 = vld [vmem:[%s1 + $0xb4] sm:$0xf]
  %v69 = vld [vmem:[%s1 + $0xb8] sm:$0xf]
  %v70 = vld [vmem:[%s1 + $0xbc] sm:$0xf]
  %v71 = vld [vmem:[%s1 + $0xc0] sm:$0xf]
  %v72 = vld [vmem:[%s1 + $0xc4] sm:$0xf]
  %v73 = vld [vmem:[%s1 + $0xc8] sm:$0xf]
  %v74 = vld [vmem:[%s1 + $0xcc] sm:$0xf]
  %v75 = vld [vmem:[%s1 + $0xd0] sm:$0xf]
  %v76 = vld [vmem:[%s1 + $0xd4] sm:$0xf]
  %v77 = vld [vmem:[%s1 + $0xd8] sm:$0xf]
  %v78 = vld [vmem:[%s1 + $0xdc] sm:$0xf]
  %v79 = vld [vmem:[%s1 + $0xe0] sm:$0xf]
  %v80 = vld [vmem:[%s1 + $0xe4] sm:$0xf]
  %v81 = vld [vmem:[%s1 + $0xe8] sm:$0xf]
  %v82 = vld [vmem:[%s1 + $0xec] sm:$0xf]
  %v83 = vld [vmem:[%s1 + $0xf0] sm:$0xf]
  %v84 = vld [vmem:[%s1 + $0xf4] sm:$0xf]
  %v85 = vld [vmem:[%s1 + $0xf8] sm:$0xf]
  %v86 = vld [vmem:[%s1 + $0xfc] sm:$0xf]
  %v87 = vld [vmem:[%s1 + $0x100] sm:$0xf]
  %v88 = vld [vmem:[%s1 + $0x104] sm:$0xf]
  %v89 = vld [vmem:[%s1 + $0x108] sm:$0xf]
  %v90 = vld [vmem:[%s1 + $0x10c] sm:$0xf]
  %v91 = vld [vmem:[%s1 + $0x110] sm:$0xf]
  %v92 = vld [vmem:[%s1 + $0x114] sm:$0xf]
  %v93 = vld [vmem:[%s1 + $0x118] sm:$0xf]
  %v94 = vld [vmem:[%s1 + $0x11c] sm:$0xf]
  %v95 = vld [vmem:[%s1 + $0x120] sm:$0xf]
  %v96 = vld [vmem:[%s1 + $0x124] sm:$0xf]
  %v97 = vld [vmem:[%s1 + $0x128] sm:$0xf]
  %v98 = vld [vmem:[%s1 + $0x12c] sm:$0xf]
  %v99 = vld [vmem:[%s1 + $0x130] sm:$0xf]
  %v100 = vld [vmem:[%s1 + $0x134] sm:$0xf]
  %v101 = vld [vmem:[%s1 + $0x138] sm:$0xf]
  %v102 = vld [vmem:[%s1 + $0x13c] sm:$0xf]
  %v103 = vld [vmem:[%s1 + $0x140] sm:$0xf]
  %v104 = vld [vmem:[%s1 + $0x144] sm:$0xf]
  %v105 = vld [vmem:[%s1 + $0x148] sm:$0xf]
  %v106 = vld [vmem:[%s1 + $0x14c] sm:$0xf]
  %v107 = vld [vmem:[%s1 + $0x150] sm:$0xf]
  %v108 = vld [vmem:[%s1 + $0x154] sm:$0xf]
  %v109 = vld [vmem:[%s1 + $0x158] sm:$0xf]
  %v110 = vld [vmem:[%s1 + $0x15c] sm:$0xf]
  %v111 = vld [vmem:[%s1 + $0x160] sm:$0xf]
  %v112 = vld [vmem:[%s1 + $0x164] sm:$0xf]
  %v113 = vld [vmem:[%s1 + $0x168] sm:$0xf]
  %v114 = vld [vmem:[%s1 + $0x16c] sm:$0xf]
  %v115 = vld [vmem:[%s1 + $0x170] sm:$0xf]
  %v116 = vld [vmem:[%s1 + $0x174] sm:$0xf]
  %v117 = vld [vmem:[%s1 + $0x178] sm:$0xf]
  %v118 = vld [vmem:[%s1 + $0x17c] sm:$0xf]
  %v119 = vld [vmem:[%s1 + $0x180] sm:$0xf]
  %v120 = vld [vmem:[%s1 + $0x184] sm:$0xf]
  %v121 = vld [vmem:[%s1 + $0x188] sm:$0xf]
  %v122 = vld [vmem:[%s1 + $0x18c] sm:$0xf]
  %v123 = vld [vmem:[%s1 + $0x190] sm:$0xf]
  %v124 = vld [vmem:[%s1 + $0x194] sm:$0xf]
  %v125 = vld [vmem:[%s1 + $0x198] sm:$0xf]
  %v126 = vld [vmem:[%s1 + $0x19c] sm:$0xf]
  %v127 = vld [vmem:[%s1 + $0x1a0] sm:$0xf]
  %v128 = vld [vmem:[%s1 + $0x1a4] sm:$0xf]
  %v129 = vld [vmem:[%s1 + $0x1a8] sm:$0xf]
  %v130 = vld [vmem:[%s1 + $0x1ac] sm:$0xf]
  %v131 = vld [vmem:[%s1 + $0x1b0] sm:$0xf]
  %v132 = vld [vmem:[%s1 + $0x1b4] sm:$0xf]
  %v133 = vld [vmem:[%s1 + $0x1b8] sm:$0xf]
  %v134 = vld [vmem:[%s1 + $0x1bc] sm:$0xf]
  %v135 = vld [vmem:[%s1 + $0x1c0] sm:$0xf]
  %v136 = vld [vmem:[%s1 + $0x1c4] sm:$0xf]
  %v137 = vld [vmem:[%s1 + $0x1c8] sm:$0xf]
  %v138 = vld [vmem:[%s1 + $0x1cc] sm:$0xf]
  %v139 = vld [vmem:[%s1 + $0x1d0] sm:$0xf]
  %v140 = vld [vmem:[%s1 + $0x1d4] sm:$0xf]
  %v141 = vld [vmem:[%s1 + $0x1d8] sm:$0xf]
  %v142 = vld [vmem:[%s1 + $0x1dc] sm:$0xf]
  %v143 = vld [vmem:[%s1 + $0x1e0] sm:$0xf]
  %v144 = vld [vmem:[%s1 + $0x1e4] sm:$0xf]
  %v145 = vld [vmem:[%s1 + $0x1e8] sm:$0xf]
  %v146 = vld [vmem:[%s1 + $0x1ec] sm:$0xf]
  %v147 = vld [vmem:[%s1 + $0x1f0] sm:$0xf]
  %v148 = vld [vmem:[%s1 + $0x1f4] sm:$0xf]
  %v149 = vld [vmem:[%s1 + $0x1f8] sm:$0xf]
  %v150 = vld [vmem:[%s1 + $0x1fc] sm:$0xf]
  %v151 = vld [vmem:[%s2] sm:$0x1]
  %v152 = vlaneseq
  %v153 = vshrl.u32 %v152, 7
  %v154 = vsub.s32 0, %v153
  %v155 = vrot.slane %v151, %v154
  %v164 = vunpack.c.l.b16 %v15
  %v165 = vunpack.c.h.b16 %v15
  %v166 = vunpack.c.l.b16 %v16
  %v167 = vunpack.c.h.b16 %v16
  %v168 = vunpack.c.l.b16 %v17
  %v169 = vunpack.c.h.b16 %v17
  %v170 = vunpack.c.l.b16 %v18
  %v171 = vunpack.c.h.b16 %v18
  %v172 = vunpack.c.l.b16 %v19
  %v173 = vunpack.c.h.b16 %v19
  %v174 = vunpack.c.l.b16 %v20
  %v175 = vunpack.c.h.b16 %v20
  %v176 = vunpack.c.l.b16 %v21
  %v177 = vunpack.c.h.b16 %v21
  %v178 = vunpack.c.l.b16 %v22
  %v179 = vunpack.c.h.b16 %v22
  %v180 = vpack.c.b16 %v172, %v164
  %v181 = vpack.c.b16 %v173, %v165
  %v182 = vpack.c.b16 %v174, %v166
  %v183 = vpack.c.b16 %v175, %v167
  %v184 = vpack.c.b16 %v176, %v168
  %v185 = vpack.c.b16 %v177, %v169
  %v186 = vpack.c.b16 %v178, %v170
  %v187 = vpack.c.b16 %v179, %v171
  %v324 = vunpack.c.l.b16 %v23
  %v325 = vunpack.c.l.b16 %v24
  %v326 = vunpack.c.l.b16 %v25
  %v327 = vunpack.c.l.b16 %v26
  %v328 = vunpack.c.l.b16 %v27
  %v329 = vunpack.c.l.b16 %v28
  %v330 = vunpack.c.l.b16 %v29
  %v331 = vunpack.c.l.b16 %v30
  %v332 = vunpack.c.l.b16 %v31
  %v333 = vunpack.c.l.b16 %v32
  %v334 = vunpack.c.l.b16 %v33
  %v335 = vunpack.c.l.b16 %v34
  %v336 = vunpack.c.l.b16 %v35
  %v337 = vunpack.c.l.b16 %v36
  %v338 = vunpack.c.l.b16 %v37
  %v339 = vunpack.c.l.b16 %v38
  %v340 = vunpack.c.l.b16 %v39
  %v341 = vunpack.c.l.b16 %v40
  %v342 = vunpack.c.l.b16 %v41
  %v343 = vunpack.c.l.b16 %v42
  %v344 = vunpack.c.l.b16 %v43
  %v345 = vunpack.c.l.b16 %v44
  %v346 = vunpack.c.l.b16 %v45
  %v347 = vunpack.c.l.b16 %v46
  %v348 = vunpack.c.l.b16 %v47
  %v349 = vunpack.c.l.b16 %v48
  %v350 = vunpack.c.l.b16 %v49
  %v351 = vunpack.c.l.b16 %v50
  %v352 = vunpack.c.l.b16 %v51
  %v353 = vunpack.c.l.b16 %v52
  %v354 = vunpack.c.l.b16 %v53
  %v355 = vunpack.c.l.b16 %v54
  %v356 = vunpack.c.l.b16 %v55
  %v357 = vunpack.c.l.b16 %v56
  %v358 = vunpack.c.l.b16 %v57
  %v359 = vunpack.c.l.b16 %v58
  %v360 = vunpack.c.l.b16 %v59
  %v361 = vunpack.c.l.b16 %v60
  %v362 = vunpack.c.l.b16 %v61
  %v363 = vunpack.c.l.b16 %v62
  %v364 = vunpack.c.l.b16 %v63
  %v365 = vunpack.c.l.b16 %v64
  %v366 = vunpack.c.l.b16 %v65
  %v367 = vunpack.c.l.b16 %v66
  %v368 = vunpack.c.l.b16 %v67
  %v369 = vunpack.c.l.b16 %v68
  %v370 = vunpack.c.l.b16 %v69
  %v371 = vunpack.c.l.b16 %v70
  %v372 = vunpack.c.l.b16 %v71
  %v373 = vunpack.c.l.b16 %v72
  %v374 = vunpack.c.l.b16 %v73
  %v375 = vunpack.c.l.b16 %v74
  %v376 = vunpack.c.l.b16 %v75
  %v377 = vunpack.c.l.b16 %v76
  %v378 = vunpack.c.l.b16 %v77
  %v379 = vunpack.c.l.b16 %v78
  %v380 = vunpack.c.l.b16 %v79
  %v381 = vunpack.c.l.b16 %v80
  %v382 = vunpack.c.l.b16 %v81
  %v383 = vunpack.c.l.b16 %v82
  %v384 = vunpack.c.l.b16 %v83
  %v385 = vunpack.c.l.b16 %v84
  %v386 = vunpack.c.l.b16 %v85
  %v387 = vunpack.c.l.b16 %v86
  %v388 = vunpack.c.l.b16 %v87
  %v389 = vunpack.c.l.b16 %v88
  %v390 = vunpack.c.l.b16 %v89
  %v391 = vunpack.c.l.b16 %v90
  %v392 = vunpack.c.l.b16 %v91
  %v393 = vunpack.c.l.b16 %v92
  %v394 = vunpack.c.l.b16 %v93
  %v395 = vunpack.c.l.b16 %v94
  %v396 = vunpack.c.l.b16 %v95
  %v397 = vunpack.c.l.b16 %v96
  %v398 = vunpack.c.l.b16 %v97
  %v399 = vunpack.c.l.b16 %v98
  %v400 = vunpack.c.l.b16 %v99
  %v401 = vunpack.c.l.b16 %v100
  %v402 = vunpack.c.l.b16 %v101
  %v403 = vunpack.c.l.b16 %v102
  %v404 = vunpack.c.l.b16 %v103
  %v405 = vunpack.c.l.b16 %v104
  %v406 = vunpack.c.l.b16 %v105
  %v407 = vunpack.c.l.b16 %v106
  %v408 = vunpack.c.l.b16 %v107
  %v409 = vunpack.c.l.b16 %v108
  %v410 = vunpack.c.l.b16 %v109
  %v411 = vunpack.c.l.b16 %v110
  %v412 = vunpack.c.l.b16 %v111
  %v413 = vunpack.c.l.b16 %v112
  %v414 = vunpack.c.l.b16 %v113
  %v415 = vunpack.c.l.b16 %v114
  %v416 = vunpack.c.l.b16 %v115
  %v417 = vunpack.c.l.b16 %v116
  %v418 = vunpack.c.l.b16 %v117
  %v419 = vunpack.c.l.b16 %v118
  %v420 = vunpack.c.l.b16 %v119
  %v421 = vunpack.c.l.b16 %v120
  %v422 = vunpack.c.l.b16 %v121
  %v423 = vunpack.c.l.b16 %v122
  %v424 = vunpack.c.l.b16 %v123
  %v425 = vunpack.c.l.b16 %v124
  %v426 = vunpack.c.l.b16 %v125
  %v427 = vunpack.c.l.b16 %v126
  %v428 = vunpack.c.l.b16 %v127
  %v429 = vunpack.c.l.b16 %v128
  %v430 = vunpack.c.l.b16 %v129
  %v431 = vunpack.c.l.b16 %v130
  %v432 = vunpack.c.l.b16 %v131
  %v433 = vunpack.c.l.b16 %v132
  %v434 = vunpack.c.l.b16 %v133
  %v435 = vunpack.c.l.b16 %v134
  %v436 = vunpack.c.l.b16 %v135
  %v437 = vunpack.c.l.b16 %v136
  %v438 = vunpack.c.l.b16 %v137
  %v439 = vunpack.c.l.b16 %v138
  %v440 = vunpack.c.l.b16 %v139
  %v441 = vunpack.c.l.b16 %v140
  %v442 = vunpack.c.l.b16 %v141
  %v443 = vunpack.c.l.b16 %v142
  %v444 = vunpack.c.l.b16 %v143
  %v445 = vunpack.c.l.b16 %v144
  %v446 = vunpack.c.l.b16 %v145
  %v447 = vunpack.c.l.b16 %v146
  %v448 = vunpack.c.l.b16 %v147
  %v449 = vunpack.c.l.b16 %v148
  %v450 = vunpack.c.l.b16 %v149
  %v451 = vunpack.c.l.b16 %v150
  %v452 = vpack.c.b16 %v325, %v324
  %v453 = vpack.c.b16 %v327, %v326
  %v454 = vpack.c.b16 %v329, %v328
  %v455 = vpack.c.b16 %v331, %v330
  %v456 = vpack.c.b16 %v333, %v332
  %v457 = vpack.c.b16 %v335, %v334
  %v458 = vpack.c.b16 %v337, %v336
  %v459 = vpack.c.b16 %v339, %v338
  %v460 = vpack.c.b16 %v341, %v340
  %v461 = vpack.c.b16 %v343, %v342
  %v462 = vpack.c.b16 %v345, %v344
  %v463 = vpack.c.b16 %v347, %v346
  %v464 = vpack.c.b16 %v349, %v348
  %v465 = vpack.c.b16 %v351, %v350
  %v466 = vpack.c.b16 %v353, %v352
  %v467 = vpack.c.b16 %v355, %v354
  %v468 = vpack.c.b16 %v357, %v356
  %v469 = vpack.c.b16 %v359, %v358
  %v470 = vpack.c.b16 %v361, %v360
  %v471 = vpack.c.b16 %v363, %v362
  %v472 = vpack.c.b16 %v365, %v364
  %v473 = vpack.c.b16 %v367, %v366
  %v474 = vpack.c.b16 %v369, %v368
  %v475 = vpack.c.b16 %v371, %v370
  %v476 = vpack.c.b16 %v373, %v372
  %v477 = vpack.c.b16 %v375, %v374
  %v478 = vpack.c.b16 %v377, %v376
  %v479 = vpack.c.b16 %v379, %v378
  %v480 = vpack.c.b16 %v381, %v380
  %v481 = vpack.c.b16 %v383, %v382
  %v482 = vpack.c.b16 %v385, %v384
  %v483 = vpack.c.b16 %v387, %v386
  %v484 = vpack.c.b16 %v389, %v388
  %v485 = vpack.c.b16 %v391, %v390
  %v486 = vpack.c.b16 %v393, %v392
  %v487 = vpack.c.b16 %v395, %v394
  %v488 = vpack.c.b16 %v397, %v396
  %v489 = vpack.c.b16 %v399, %v398
  %v490 = vpack.c.b16 %v401, %v400
  %v491 = vpack.c.b16 %v403, %v402
  %v492 = vpack.c.b16 %v405, %v404
  %v493 = vpack.c.b16 %v407, %v406
  %v494 = vpack.c.b16 %v409, %v408
  %v495 = vpack.c.b16 %v411, %v410
  %v496 = vpack.c.b16 %v413, %v412
  %v497 = vpack.c.b16 %v415, %v414
  %v498 = vpack.c.b16 %v417, %v416
  %v499 = vpack.c.b16 %v419, %v418
  %v500 = vpack.c.b16 %v421, %v420
  %v501 = vpack.c.b16 %v423, %v422
  %v502 = vpack.c.b16 %v425, %v424
  %v503 = vpack.c.b16 %v427, %v426
  %v504 = vpack.c.b16 %v429, %v428
  %v505 = vpack.c.b16 %v431, %v430
  %v506 = vpack.c.b16 %v433, %v432
  %v507 = vpack.c.b16 %v435, %v434
  %v508 = vpack.c.b16 %v437, %v436
  %v509 = vpack.c.b16 %v439, %v438
  %v510 = vpack.c.b16 %v441, %v440
  %v511 = vpack.c.b16 %v443, %v442
  %v512 = vpack.c.b16 %v445, %v444
  %v513 = vpack.c.b16 %v447, %v446
  %v514 = vpack.c.b16 %v449, %v448
  %v515 = vpack.c.b16 %v451, %v450
  %580 = vmatprep.subr.bf16.mxu0 0
  %581 = vmatpush1.bf16.msra.mxu0 %v452
  %582 = vmatprep.subr.bf16.mxu0 0
  %583 = vmatpush1.bf16.msra.mxu0 %v453
  %584 = vmatprep.subr.bf16.mxu0 0
  %585 = vmatpush1.bf16.msra.mxu0 %v454
  %586 = vmatprep.subr.bf16.mxu0 0
  %587 = vmatpush1.bf16.msra.mxu0 %v455
  %588 = vmatprep.subr.bf16.mxu0 0
  %589 = vmatpush1.bf16.msra.mxu0 %v456
  %590 = vmatprep.subr.bf16.mxu0 0
  %591 = vmatpush1.bf16.msra.mxu0 %v457
  %592 = vmatprep.subr.bf16.mxu0 0
  %593 = vmatpush1.bf16.msra.mxu0 %v458
  %594 = vmatprep.subr.bf16.mxu0 0
  %595 = vmatpush1.bf16.msra.mxu0 %v459
  %596 = vmatprep.subr.bf16.mxu0 0
  %597 = vmatpush1.bf16.msra.mxu0 %v460
  %598 = vmatprep.subr.bf16.mxu0 0
  %599 = vmatpush1.bf16.msra.mxu0 %v461
  %600 = vmatprep.subr.bf16.mxu0 0
  %601 = vmatpush1.bf16.msra.mxu0 %v462
  %602 = vmatprep.subr.bf16.mxu0 0
  %603 = vmatpush1.bf16.msra.mxu0 %v463
  %604 = vmatprep.subr.bf16.mxu0 0
  %605 = vmatpush1.bf16.msra.mxu0 %v464
  %606 = vmatprep.subr.bf16.mxu0 0
  %607 = vmatpush1.bf16.msra.mxu0 %v465
  %608 = vmatprep.subr.bf16.mxu0 0
  %609 = vmatpush1.bf16.msra.mxu0 %v466
  %610 = vmatprep.subr.bf16.mxu0 0
  %611 = vmatpush1.bf16.msra.mxu0 %v467
  %612 = vmatprep.mubr.bf16.mxu0 %v181
  %613 = vmatmul.mubr.bf16.gmra.mrb[0].mxu0 %v180
  %v614 = vpop.f32.mrb[0].mxu0
  %v615 = vadd.f32 %v155, %v614
  %v616 = vpop.f32.mrb[0].mxu0
  %v617 = vpop.f32.mrb[0].mxu0
  %v618 = vadd.f32 %v155, %v617
  %v619 = vpop.f32.mrb[0].mxu0
  %620 = vdwg.mxu0
  %621 = vmatprep.subr.bf16.mxu0 0
  %622 = vmatpush1.bf16.msra.mxu0 %v468
  %623 = vmatprep.subr.bf16.mxu0 0
  %624 = vmatpush1.bf16.msra.mxu0 %v469
  %625 = vmatprep.subr.bf16.mxu0 0
  %626 = vmatpush1.bf16.msra.mxu0 %v470
  %627 = vmatprep.subr.bf16.mxu0 0
  %628 = vmatpush1.bf16.msra.mxu0 %v471
  %629 = vmatprep.subr.bf16.mxu0 0
  %630 = vmatpush1.bf16.msra.mxu0 %v472
  %631 = vmatprep.subr.bf16.mxu0 0
  %632 = vmatpush1.bf16.msra.mxu0 %v473
  %633 = vmatprep.subr.bf16.mxu0 0
  %634 = vmatpush1.bf16.msra.mxu0 %v474
  %635 = vmatprep.subr.bf16.mxu0 0
  %636 = vmatpush1.bf16.msra.mxu0 %v475
  %637 = vmatprep.subr.bf16.mxu0 0
  %638 = vmatpush1.bf16.msra.mxu0 %v476
  %639 = vmatprep.subr.bf16.mxu0 0
  %640 = vmatpush1.bf16.msra.mxu0 %v477
  %641 = vmatprep.subr.bf16.mxu0 0
  %642 = vmatpush1.bf16.msra.mxu0 %v478
  %643 = vmatprep.subr.bf16.mxu0 0
  %644 = vmatpush1.bf16.msra.mxu0 %v479
  %645 = vmatprep.subr.bf16.mxu0 0
  %646 = vmatpush1.bf16.msra.mxu0 %v480
  %647 = vmatprep.subr.bf16.mxu0 0
  %648 = vmatpush1.bf16.msra.mxu0 %v481
  %649 = vmatprep.subr.bf16.mxu0 0
  %650 = vmatpush1.bf16.msra.mxu0 %v482
  %651 = vmatprep.subr.bf16.mxu0 0
  %652 = vmatpush1.bf16.msra.mxu0 %v483
  %653 = vmatprep.mubr.bf16.mxu0 %v183
  %654 = vmatmul.mubr.bf16.gmra.mrb[0].mxu0 %v182
  %v655 = vpop.f32.mrb[0].mxu0
  %v656 = vadd.f32 %v615, %v655
  %v657 = vpop.f32.mrb[0].mxu0
  %v658 = vpop.f32.mrb[0].mxu0
  %v659 = vadd.f32 %v618, %v658
  %v660 = vpop.f32.mrb[0].mxu0
  %661 = vdwg.mxu0
  %662 = vmatprep.subr.bf16.mxu0 0
  %663 = vmatpush1.bf16.msra.mxu0 %v484
  %664 = vmatprep.subr.bf16.mxu0 0
  %665 = vmatpush1.bf16.msra.mxu0 %v485
  %666 = vmatprep.subr.bf16.mxu0 0
  %667 = vmatpush1.bf16.msra.mxu0 %v486
  %668 = vmatprep.subr.bf16.mxu0 0
  %669 = vmatpush1.bf16.msra.mxu0 %v487
  %670 = vmatprep.subr.bf16.mxu0 0
  %671 = vmatpush1.bf16.msra.mxu0 %v488
  %672 = vmatprep.subr.bf16.mxu0 0
  %673 = vmatpush1.bf16.msra.mxu0 %v489
  %674 = vmatprep.subr.bf16.mxu0 0
  %675 = vmatpush1.bf16.msra.mxu0 %v490
  %676 = vmatprep.subr.bf16.mxu0 0
  %677 = vmatpush1.bf16.msra.mxu0 %v491
  %678 = vmatprep.subr.bf16.mxu0 0
  %679 = vmatpush1.bf16.msra.mxu0 %v492
  %680 = vmatprep.subr.bf16.mxu0 0
  %681 = vmatpush1.bf16.msra.mxu0 %v493
  %682 = vmatprep.subr.bf16.mxu0 0
  %683 = vmatpush1.bf16.msra.mxu0 %v494
  %684 = vmatprep.subr.bf16.mxu0 0
  %685 = vmatpush1.bf16.msra.mxu0 %v495
  %686 = vmatprep.subr.bf16.mxu0 0
  %687 = vmatpush1.bf16.msra.mxu0 %v496
  %688 = vmatprep.subr.bf16.mxu0 0
  %689 = vmatpush1.bf16.msra.mxu0 %v497
  %690 = vmatprep.subr.bf16.mxu0 0
  %691 = vmatpush1.bf16.msra.mxu0 %v498
  %692 = vmatprep.subr.bf16.mxu0 0
  %693 = vmatpush1.bf16.msra.mxu0 %v499
  %694 = vmatprep.mubr.bf16.mxu0 %v185
  %695 = vmatmul.mubr.bf16.gmra.mrb[0].mxu0 %v184
  %v696 = vpop.f32.mrb[0].mxu0
  %v697 = vadd.f32 %v656, %v696
  %v698 = vpop.f32.mrb[0].mxu0
  %v699 = vpop.f32.mrb[0].mxu0
  %v700 = vadd.f32 %v659, %v699
  %v701 = vpop.f32.mrb[0].mxu0
  %702 = vdwg.mxu0
  %703 = vmatprep.subr.bf16.mxu0 0
  %704 = vmatpush1.bf16.msra.mxu0 %v500
  %705 = vmatprep.subr.bf16.mxu0 0
  %706 = vmatpush1.bf16.msra.mxu0 %v501
  %707 = vmatprep.subr.bf16.mxu0 0
  %708 = vmatpush1.bf16.msra.mxu0 %v502
  %709 = vmatprep.subr.bf16.mxu0 0
  %710 = vmatpush1.bf16.msra.mxu0 %v503
  %711 = vmatprep.subr.bf16.mxu0 0
  %712 = vmatpush1.bf16.msra.mxu0 %v504
  %713 = vmatprep.subr.bf16.mxu0 0
  %714 = vmatpush1.bf16.msra.mxu0 %v505
  %715 = vmatprep.subr.bf16.mxu0 0
  %716 = vmatpush1.bf16.msra.mxu0 %v506
  %717 = vmatprep.subr.bf16.mxu0 0
  %718 = vmatpush1.bf16.msra.mxu0 %v507
  %719 = vmatprep.subr.bf16.mxu0 0
  %720 = vmatpush1.bf16.msra.mxu0 %v508
  %721 = vmatprep.subr.bf16.mxu0 0
  %722 = vmatpush1.bf16.msra.mxu0 %v509
  %723 = vmatprep.subr.bf16.mxu0 0
  %724 = vmatpush1.bf16.msra.mxu0 %v510
  %725 = vmatprep.subr.bf16.mxu0 0
  %726 = vmatpush1.bf16.msra.mxu0 %v511
  %727 = vmatprep.subr.bf16.mxu0 0
  %728 = vmatpush1.bf16.msra.mxu0 %v512
  %729 = vmatprep.subr.bf16.mxu0 0
  %730 = vmatpush1.bf16.msra.mxu0 %v513
  %731 = vmatprep.subr.bf16.mxu0 0
  %732 = vmatpush1.bf16.msra.mxu0 %v514
  %733 = vmatprep.subr.bf16.mxu0 0
  %734 = vmatpush1.bf16.msra.mxu0 %v515
  %735 = vmatprep.mubr.bf16.mxu0 %v187
  %736 = vmatmul.mubr.bf16.gmra.mrb[0].mxu0 %v186
  %v737 = vpop.f32.mrb[0].mxu0
  %v738 = vadd.f32 %v697, %v737
  %v739 = vpop.f32.mrb[0].mxu0
  %v740 = vpop.f32.mrb[0].mxu0
  %v741 = vadd.f32 %v700, %v740
  %v742 = vpop.f32.mrb[0].mxu0
  %743 = vdwg.mxu0
  %v744 = vld [vmem:[%s2 + $0x5] sm:$0x1]
  %vm745 = vcmp.gt.f32.partialorder %v738, 0.0
  %vm746 = vcmp.gt.f32.partialorder %v741, 0.0
  %s748 = vtos %v744
  %v749 = vstv %s748
  %v751 = vmul.f32 %v749, %v738
  %v752 = vmul.f32 %v749, %v741
  %v753 = vsel %vm745, %v738, %v751
  %v754 = vsel %vm746, %v741, %v752
  %v755 = vld [vmem:[%s2 + $0x1] sm:$0x1]
  %v756 = vld [vmem:[%s2 + $0x2] sm:$0x1]
  %v757 = vlaneseq
  %v758 = vshrl.u32 %v757, 7
  %v759 = vsub.s32 0, %v758
  %v760 = vrot.slane %v755, %v759
  %v761 = vmul.f32 %v753, %v760
  %v762 = vmul.f32 %v754, %v760
  %vm763 = vcmask 261120
  %v764 = vsel %vm763, %v761, 0.0
  %765 = vadd.xlane.f32.xlu0 %v764
  %v766 = vpop.xlane.xlu0 %765
  %v767 = vsel %vm763, %v762, 0.0
  %768 = vadd.xlane.f32.xlu0 %v767
  %v769 = vpop.xlane.xlu0 %768
  %v770 = vlaneseq
  %v771 = vshrl.u32 %v770, 7
  %v772 = vsub.s32 0, %v771
  %v773 = vrot.slane %v744, %v772
  %v774 = vadd.f32 %v766, %v773
  %v775 = vadd.f32 %v769, %v773
  %v776 = vlaneseq
  %v777 = vshrl.u32 %v776, 7
  %v778 = vsub.s32 0, %v777
  %v779 = vrot.slane %v756, %v778
  %v780 = vmul.f32 %v753, %v779
  %v781 = vmul.f32 %v754, %v779
  %v782 = vsel %vm763, %v780, 0.0
  %783 = vadd.xlane.f32.xlu0 %v782
  %v784 = vpop.xlane.xlu0 %783
  %v785 = vsel %vm763, %v781, 0.0
  %786 = vadd.xlane.f32.xlu0 %v785
  %v787 = vpop.xlane.xlu0 %786
  %v788 = vadd.f32 %v784, %v773
  %v789 = vadd.f32 %v787, %v773
  %v790 = vld [vmem:[%s2 + $0x3] sm:$0x1]
  %v791 = vld [vmem:[%s2 + $0x4] sm:$0x1]
  %793 = vset.pattern.permute.xlu0 1
  %794 = vperm.xlu0 %793, %v774
  %v795 = vpop.permute.xlu0 %794
  %798 = vset.pattern.permute.xlu0 1
  %799 = vperm.xlu0 %798, %v775
  %v800 = vpop.permute.xlu0 %799
  %v802 = vlaneseq
  %v803 = vshrl.u32 %v802, 7
  %v804 = vsub.s32 0, %v803
  %v805 = vrot.slane %v790, %v804
  %v806 = vmul.f32 %v795, %v805
  %v807 = vmul.f32 %v800, %v805
  %809 = vset.pattern.permute.xlu0 2
  %810 = vperm.xlu0 %809, %v788
  %v811 = vpop.permute.xlu0 %810
  %814 = vset.pattern.permute.xlu0 2
  %815 = vperm.xlu0 %814, %v789
  %v816 = vpop.permute.xlu0 %815
  %v818 = vlaneseq
  %v819 = vshrl.u32 %v818, 7
  %v820 = vsub.s32 0, %v819
  %v821 = vrot.slane %v791, %v820
  %v822 = vmul.f32 %v811, %v821
  %v823 = vmul.f32 %v816, %v821
  %v824 = vadd.f32 %v806, %v822
  %v825 = vadd.f32 %v807, %v823
  %v826 = vmul.f32 %v824, 2.0
  %v827 = vmul.f32 %v825, 2.0
  %v828 = vmul.f32 %v774, %v774
  %v829 = vmul.f32 %v775, %v775
  %v830 = vmul.f32 %v788, %v788
  %v831 = vmul.f32 %v789, %v789
  %834 = vrot.lane.b32.xlu0 %v830, 127
  %v835 = vpop.permute.xlu0 %834
  %836 = vrot.lane.b32.xlu0 %v831, 127
  %v837 = vpop.permute.xlu0 %836
  %v840 = vadd.f32 %v828, %v835
  %v841 = vadd.f32 %v829, %v837
  %v842 = vmul.f32 %v790, %v790
  %v843 = vmul.f32 %v791, %v791
  %v844 = vadd.f32 %v842, %v843
  %846 = vset.pattern.permute.xlu0 1
  %847 = vperm.xlu0 %846, %v840
  %v848 = vpop.permute.xlu0 %847
  %851 = vset.pattern.permute.xlu0 1
  %852 = vperm.xlu0 %851, %v841
  %v853 = vpop.permute.xlu0 %852
  %v855 = vlaneseq
  %v856 = vshrl.u32 %v855, 7
  %v857 = vsub.s32 0, %v856
  %v858 = vrot.slane %v844, %v857
  %v859 = vadd.f32 %v848, %v858
  %v860 = vadd.f32 %v853, %v858
  %v861 = vsub.f32 %v859, %v826
  %v862 = vsub.f32 %v860, %v827
  %v863 = vsub.f32 0.0, %v861
  %v864 = vsub.f32 0.0, %v862
  %v865 = vmul.f32 %v863, 2.0
  %v866 = vmul.f32 %v864, 2.0
  %vm867 = vcmask 80896
  %v868 = vsel %vm867, %v865, -inf
  %869 = vmax.xlane.f32.xlu0 %v868
  %v870 = vpop.xlane.xlu0 %869
  %v871 = vsel %vm867, %v866, -inf
  %872 = vmax.xlane.f32.xlu0 %v871
  %v873 = vpop.xlane.xlu0 %872
  %v874 = vsub.f32 %v865, %v870
  %v875 = vsub.f32 %v866, %v873
  %v876 = vmul.f32 %v874, 1.442695
  %v877 = vpow.pop %v876
  %v878 = vmul.f32 %v875, 1.442695
  %v879 = vpow.pop %v878
  %v880 = vsel %vm867, %v877, 0.0
  %881 = vadd.xlane.f32.xlu0 %v880
  %v882 = vpop.xlane.xlu0 %881
  %v883 = vsel %vm867, %v879, 0.0
  %884 = vadd.xlane.f32.xlu0 %v883
  %v885 = vpop.xlane.xlu0 %884
  %v886 = vlog2.pop %v882
  %v887 = vmul.f32 %v886, 0.6931472
  %v888 = vlog2.pop %v885
  %v889 = vmul.f32 %v888, 0.6931472
  %v890 = vadd.f32 %v887, %v870
  %v891 = vadd.f32 %v889, %v873
  %v892 = vsub.f32 %v865, %v890
  %v893 = vsub.f32 %v866, %v891
  %894 = vrot.lane.b32.xlu0 %v774, 127
  %v895 = vpop.permute.xlu0 %894
  %896 = vrot.lane.b32.xlu0 %v775, 127
  %v897 = vpop.permute.xlu0 %896
  %900 = vrot.lane.b32.xlu0 %v788, 127
  %v901 = vpop.permute.xlu0 %900
  %902 = vrot.lane.b32.xlu0 %v789, 127
  %v903 = vpop.permute.xlu0 %902
  %908 = vrot.lane.b32.xlu0 %v863, 32
  %v909 = vpop.permute.xlu0 %908
  %910 = vrot.lane.b32.xlu0 %v864, 32
  %v911 = vpop.permute.xlu0 %910
  %916 = vrot.lane.b32.xlu0 %v892, 64
  %v917 = vpop.permute.xlu0 %916
  %918 = vrot.lane.b32.xlu0 %v893, 64
  %v919 = vpop.permute.xlu0 %918
  %vm922 = vcmask 7168
  %v923 = vsel %vm922, %v895, %v901
  %v924 = vsel %vm922, %v897, %v903
  %vm925 = vcmask 15360
  %v926 = vsel %vm925, %v923, 0.0
  %v927 = vsel %vm925, %v924, 0.0
  %v928 = vsel %vm763, %v926, %v909
  %v929 = vsel %vm763, %v927, %v911
  %vm930 = vcmask 343040
  %v931 = vsel %vm930, %v928, 0.0
  %v932 = vsel %vm930, %v929, 0.0
  %vm933 = vcmask 523264
  %v934 = vsel %vm933, %v931, %v917
  %v935 = vsel %vm933, %v932, %v919
  %vm936 = vcmask 605184
  %v937 = vsel %vm936, %v934, 0.0
  %v938 = vsel %vm936, %v935, 0.0
  %939 = vst [vmem:[%s3] sm:$0xff] %v937
  %940 = vst [vmem:[%s3 + $0x8] sm:$0xff] %v938
  // Predicated region
  $region14: #{prototype_forward.1} parent=0 // pred_check
    _
  $region15: #{prototype_forward.1} parent=0 // pred_check_branch
    %942 = sbr.rel (0) target = $region17
  $region16: #{prototype_forward.1} parent=0 // pred_region
    _
  $region17: #{prototype_forward.1} parent=0 // pred_fallthru
    _
  // Predicated region
  $region18: #{prototype_forward.1} parent=0 // pred_check
    _
  $region19: #{prototype_forward.1} parent=0 // pred_check_branch
    %944 = sbr.rel (0) target = $region21
  $region20: #{prototype_forward.1} parent=0 // pred_region
    _
  $region21: #{prototype_forward.1} parent=0 // pred_fallthru
    _

</llo_original>
